<compile_context>
chip_gen: v5e
topology: v5e:2x2
jax: 0.10.0
libtpu: 0.0.40
codegen_flags: <defaults>
</compile_context>

<pallas_src>
import math

import jax
import jax.numpy as jnp
from jax.experimental import pallas as pl
from jax.experimental.pallas import tpu as pltpu


def _copy_kernel(x_ref, o_ref):
    # Pure element copy of the current lane-dense tile.
    o_ref[...] = x_ref[...]


def _resolve_shape(target_shape, numel):
    """Emulate torch.view's handling of a single -1 dimension."""
    target_shape = tuple(int(s) for s in target_shape)
    if -1 in target_shape:
        idx = target_shape.index(-1)
        known = 1
        for i, s in enumerate(target_shape):
            if i != idx:
                known *= s
        assert known > 0 and numel % known == 0, "view shape incompatible with input size"
        target_shape = target_shape[:idx] + (numel // known,) + target_shape[idx + 1:]
    assert math.prod(target_shape) == numel, "view shape incompatible with input size"
    return target_shape


_MIN_SUBLANE = {4: 8, 2: 16, 1: 32}     # itemsize -> native sublane tile
_TILE_BYTES = 2 * 1024 * 1024           # 2 MiB/tile -> <= 8 MiB double-buffered in+out
_VMEM_LIMIT = 32 * 1024 * 1024          # safe scoped-VMEM limit on v5e/v6e/v7x


def _materialized_copy(flat):
    """Tiled, lane-dense Pallas copy of a contiguous 1-D buffer (no padding)."""
    numel = int(flat.size)
    itemsize = jnp.dtype(flat.dtype).itemsize
    min_sub = _MIN_SUBLANE.get(itemsize, 8)

    # Widest lane dim (multiple of 128, capped at 2048) that divides numel
    # exactly, so there is no pad-concatenate and no trailing slice.
    lane = 0
    cand = 128
    while cand <= 2048 and numel % cand == 0:
        lane = cand
        cand *= 2

    if lane == 0:
        # numel not a multiple of 128: copy as one full-extent block
        # (block_shape == array shape is always layout-legal).
        # TODO(synk): very large non-128-divisible buffers would need a tiled
        # body + masked tail instead of a single whole-array block.
        slab = jnp.reshape(flat, (1, numel))
        copied = pl.pallas_call(
            _copy_kernel,
            out_shape=jax.ShapeDtypeStruct((1, numel), flat.dtype),
            compiler_params=pltpu.CompilerParams(vmem_limit_bytes=_VMEM_LIMIT),
        )(slab)
        return jnp.reshape(copied, (-1,))

    rows = numel // lane
    if rows <= min_sub:
        # Tiny input: a single full-extent block (legal: equals array dims).
        row_tile = rows
    else:
        budget_rows = max(min_sub,
                          (_TILE_BYTES // (lane * itemsize)) // min_sub * min_sub)
        row_tile = min(budget_rows, (rows // min_sub) * min_sub)
    grid = (pl.cdiv(rows, row_tile),)   # partial last block handled by Pallas

    slab = jnp.reshape(flat, (rows, lane))
    copied = pl.pallas_call(
        _copy_kernel,
        out_shape=jax.ShapeDtypeStruct((rows, lane), flat.dtype),
        grid_spec=pltpu.PrefetchScalarGridSpec(
            num_scalar_prefetch=0,
            grid=grid,
            in_specs=[pl.BlockSpec((row_tile, lane), lambda i: (i, 0))],
            out_specs=pl.BlockSpec((row_tile, lane), lambda i: (i, 0)),
        ),
        compiler_params=pltpu.CompilerParams(
            dimension_semantics=("parallel",),
            vmem_limit_bytes=_VMEM_LIMIT,
        ),
    )(slab)
    return jnp.reshape(copied, (-1,))


def view_layer(x, target_shape, *, materialize=False):
    """Pallas/JAX implementation of ViewLayer.forward: input.view(*shape).

    Default path is metadata-only (exactly what torch .view() does on a
    contiguous tensor).  Set materialize=True to force a physical copy through
    the optimized Pallas kernel (e.g. for benchmarking).
    """
    out_shape = _resolve_shape(target_shape, x.size)
    if not materialize:
        return jnp.reshape(x, out_shape)      # zero-cost, no data movement
    flat = jnp.reshape(x, (-1,))
    copied = _materialized_copy(flat)
    return jnp.reshape(copied, out_shape)


if __name__ == "__main__":
    key = jax.random.PRNGKey(0)
    # Small NCHW input: batch=2, channels=4, spatial=16x16  -> 2048 elements.
    x = jax.random.normal(key, (2, 4, 16, 16), dtype=jnp.float32)

    # ViewLayer(shape=(2, -1)) : flatten per-batch, typical VQ-VAE glue.
    target_shape = (2, -1)

    # Default (zero-cost) path — exact torch .view() semantics.
    y_fast = jax.block_until_ready(view_layer(x, target_shape))

    # Materialized path — exercises the Pallas copy kernel once.
    y_kernel = jax.block_until_ready(view_layer(x, target_shape, materialize=True))

    ref = jnp.reshape(x, (2, -1))
    assert y_fast.shape == ref.shape and y_fast.dtype == ref.dtype
    assert y_kernel.shape == ref.shape and y_kernel.dtype == ref.dtype
    assert bool(jnp.all(y_fast == ref))
    assert bool(jnp.all(y_kernel == ref))

    print("KERNEL_OK")
</pallas_src>

<mosaic_0001>
module attributes {stable_mosaic.version = 11 : i64} {
  func.func @_copy_kernel(%arg0: i32, %arg1: memref<1x2048xf32, #tpu.memory_space<vmem>>, %arg2: memref<1x2048xf32, #tpu.memory_space<vmem>>) attributes {dimension_semantics = [#tpu.dimension_semantics<parallel>], iteration_bounds = array<i64: 1>, scalar_prefetch = 0 : i64, scratch_operands = 0 : i64, tpu.core_type = #tpu.core_type<tc>, window_params = [{transform_indices = @transform_0, window_bounds = array<i64: 1, 2048>}, {transform_indices = @transform_1, window_bounds = array<i64: 1, 2048>}]} {
    %c0 = arith.constant 0 : index
    %c0_0 = arith.constant 0 : index
    %0 = vector.load %arg1[%c0, %c0_0] : memref<1x2048xf32, #tpu.memory_space<vmem>>, vector<1x2048xf32>
    %c0_1 = arith.constant 0 : index
    %c0_2 = arith.constant 0 : index
    %1 = vector.load %arg2[%c0_1, %c0_2] : memref<1x2048xf32, #tpu.memory_space<vmem>>, vector<1x2048xf32>
    tpu.vector_store %arg2[%c0_1, %c0_2], %0 {strides = array<i32>} : memref<1x2048xf32, #tpu.memory_space<vmem>>, vector<1x2048xf32>,
    return
  }
  func.func @transform_0(%arg0: i32) -> (i32, i32) {
    %c0_i32 = arith.constant 0 : i32
    %c0_i32_0 = arith.constant 0 : i32
    return %arg0, %c0_i32 : i32, i32
  }
  func.func @transform_1(%arg0: i32) -> (i32, i32) {
    %c0_i32 = arith.constant 0 : i32
    %c0_i32_0 = arith.constant 0 : i32
    return %arg0, %c0_i32 : i32, i32
  }
}

</mosaic_0001>

<llo_original>
// kernel: tpu_custom_call.1
$region0: #{tpu_custom_call.1}
  #allocation0 [shape = 'u32[]', space=smem, size = 0x4, offset = 0x4, fixed_abs, tag = 'smem constant byte address 0x4 - core index']
  #allocation1 [shape = 'u32[72,128]{1,0:T(1,128)}', space=vmem, size = 0x9000, scoped, tag = 'internal scratch']
  %s0 = inlined_call_operand.hbm [shape: f32[1,2048], index: 0, kind: input, shape index: {}]
  %s1 = inlined_call_operand.hbm [shape: f32[1,2048], index: 1, kind: output, shape index: {}]
  %s2 = sld [smem:[#allocation0]]
  $region18: #{tpu_custom_call.1} parent=0
    _
  %s4 = ssub.s32 1, %s2
  %s5 = scalar_select 0, %s4, %s2
  $region1: #{tpu_custom_call.1} parent=0
    #allocation2 [shape = 'u8[8192]{0}', space=vmem, size = 0x2000, scoped, tag = 'input window, operand 0, single buffered']
    #allocation3 [shape = 's32[1]{0}', space=sflag, size = 0x4, scoped, tag = 'scoped memory for tpu_custom_call.1']
    #allocation4 [shape = 's32[1]{0}', space=sflag, size = 0x4, scoped, tag = 'scoped memory for tpu_custom_call.1']
    #allocation5 [shape = 'u8[8192]{0}', space=vmem, size = 0x2000, scoped, tag = 'output window, operand 0, single buffered']
    %6 = vsyncpa [#allocation3], 0
    %7 = vsyncpa [#allocation4], 0
    // Predicated region
    $region2: #{tpu_custom_call.1} parent=1 // pred_check
      _
    $region3: #{tpu_custom_call.1} parent=1 // pred_check_branch
      %9 = sbr.rel (0) target = $region5
    $region4: #{tpu_custom_call.1} parent=1 // pred_region
      %11 = vsyncadd [#allocation3], 0
      %s13 = sshll.u32 %s0, 4
      %s14 = int_to_ptr.hbm [resolvable:$true] %s13
      %s15 = sshll.u32 [#allocation2], 4
      %s16 = int_to_ptr.vmem [resolvable:$true] %s15
      %18 = dma.hbm_to_vmem [thread:$0]  %s14, 256, %s16, [#allocation3]
    $region5: #{tpu_custom_call.1} parent=1 // pred_fallthru
      _
    // Predicated region
    $region6: #{tpu_custom_call.1} parent=1 // pred_check
      _
    $region7: #{tpu_custom_call.1} parent=1 // pred_check_branch
      %20 = sbr.rel (0) target = $region9
    $region8: #{tpu_custom_call.1} parent=1 // pred_region
      %22 = dma.done [#allocation3], 256
    $region9: #{tpu_custom_call.1} parent=1 // pred_fallthru
      _
    %v23 = vld [vmem:[#allocation2] sm:$0xff]
    %v24 = vld [vmem:[#allocation2 + $0x8] sm:$0xff]
    %25 = vst [vmem:[#allocation5] sm:$0xff] %v23
    %26 = vst [vmem:[#allocation5 + $0x8] sm:$0xff] %v24
    // Predicated region
    $region10: #{tpu_custom_call.1} parent=1 // pred_check
      _
    $region11: #{tpu_custom_call.1} parent=1 // pred_check_branch
      %28 = sbr.rel (0) target = $region13
    $region12: #{tpu_custom_call.1} parent=1 // pred_region
      %30 = vsyncadd [#allocation4], 0
      %s32 = sshll.u32 [#allocation5], 4
      %s33 = int_to_ptr.vmem [resolvable:$true] %s32
      %s34 = sshll.u32 %s1, 4
      %s35 = int_to_ptr.hbm [resolvable:$true] %s34
      %37 = dma.vmem_to_hbm [thread:$0]  %s33, 256, %s35, [#allocation4]
    $region13: #{tpu_custom_call.1} parent=1 // pred_fallthru
      _
    // Predicated region
    $region14: #{tpu_custom_call.1} parent=1 // pred_check
      _
    $region15: #{tpu_custom_call.1} parent=1 // pred_check_branch
      %39 = sbr.rel (0) target = $region17
    $region16: #{tpu_custom_call.1} parent=1 // pred_region
      %41 = dma.done [#allocation4], 256
    $region17: #{tpu_custom_call.1} parent=1 // pred_fallthru
      _
    %42 = vsyncpa [#allocation3], 1
    %43 = vsyncpa [#allocation4], 1

</llo_original>
